<compile_context>
chip_gen: v5e
topology: v5e:2x2
jax: 0.10.0
libtpu: 0.0.40
codegen_flags: <defaults>
</compile_context>

<pallas_src>
import math

import jax
import jax.numpy as jnp
from jax.experimental import pallas as pl
from jax.experimental.pallas import tpu as pltpu

_LANE = 128     # lane width: output-feature tiles are multiples of this
_SUBLANE = 8    # sublane width: row tiles are multiples of this


def _round_up(x, m):
    return ((x + m - 1) // m) * m


def _largest_divisor_tile(total, max_tile, mult):
    """Largest multiple of `mult` that divides `total` and is <= max_tile.
    Assumes total % mult == 0 and max_tile >= mult."""
    best = mult
    t = mult
    limit = min(total, max_tile)
    while t <= limit:
        if total % t == 0:
            best = t
        t += mult
    return best


def _pick_row_tile(rows, k, target_rows):
    """Row tile: multiple of k (per-member pattern is tile-periodic) and of 8
    (sublane tiling).  rows are padded up to a multiple of the tile, and the tile
    is capped so the row grid has >= 2 steps when possible (v7x: 2 TensorCores)."""
    unit = (k * _SUBLANE) // math.gcd(k, _SUBLANE)        # lcm(k, 8)
    total_units = -(-rows // unit)                        # ceil(rows / unit)
    n_units = max(1, min(target_rows // unit, total_units))
    if total_units >= 2:
        n_units = min(n_units, total_units // 2)          # keep >= 2 row steps
    tr = max(1, n_units) * unit
    rows_pad = _round_up(rows, tr)
    return tr, rows_pad


def _pick_k_tile(d_in, max_tk):
    """d_in reduction tile.  Only split when d_in is large and 128-divisible;
    otherwise use the full extent (single reduction step, no d_in padding)."""
    if d_in > max_tk and d_in % _LANE == 0:
        return _largest_divisor_tile(d_in, max_tk, _LANE)
    return d_in


def _make_lee_kernel(has_r, has_s, has_b, matmul_dtype):
    matmul_dtype = jnp.dtype(matmul_dtype)

    def kernel(*refs):
        idx = 0
        x_ref = refs[idx]; idx += 1
        w_ref = refs[idx]; idx += 1
        r_ref = refs[idx] if has_r else None; idx += int(has_r)
        s_ref = refs[idx] if has_s else None; idx += int(has_s)
        b_ref = refs[idx] if has_b else None; idx += int(has_b)
        o_ref = refs[idx]; idx += 1
        acc_ref = refs[idx]                                # (tr, tn) f32 scratch

        kk = pl.program_id(2)                              # d_in reduction step

        @pl.when(kk == 0)
        def _init():
            acc_ref[...] = jnp.zeros_like(acc_ref)

        x = x_ref[...]
        if x.dtype != matmul_dtype:
            x = x.astype(matmul_dtype)   # only x is cast in-kernel; params are pre-cast
        if has_r:
            x = x * r_ref[...]           # per-member input scaling, in matmul_dtype
        # Shared-weight MXU matmul with f32 accumulation.
        acc_ref[...] += jnp.dot(x, w_ref[...], preferred_element_type=jnp.float32)

        @pl.when(kk == pl.num_programs(2) - 1)
        def _finalize():
            y = acc_ref[...]
            if has_s:
                y = y * s_ref[...]       # per-member output scaling, f32 epilogue
            if has_b:
                y = y + b_ref[...]       # shared or per-member bias, f32
            o_ref[...] = y.astype(o_ref.dtype)   # single downcast at the store

    return kernel


def linear_efficient_ensemble_forward(params, x, *, block_rows=512, block_n=512,
                                      block_k=2048, matmul_dtype=jnp.bfloat16,
                                      out_dtype=None):
    """Fused LinearEfficientEnsemble forward.

    params: PyTorch-layout arrays
      {'weight': (d_out, d_in), 'r': (k, d_in)|None, 's': (k, d_out)|None,
       'bias': (d_out,)|(k, d_out)|None}
    x: (B, k, d_in).  matmul_dtype: operand dtype for the MXU (f32 accumulation).
    """
    assert x.ndim == 3, "LinearEfficientEnsemble expects x of shape (B, k, d_in)"
    batch, k, d_in = x.shape
    weight, r, s, bias = params["weight"], params["r"], params["s"], params["bias"]
    d_out, d_in_w = weight.shape
    assert d_in_w == d_in
    if r is not None:
        assert r.shape == (k, d_in)
    if s is not None:
        assert s.shape == (k, d_out)

    matmul_dtype = jnp.dtype(matmul_dtype)
    out_dtype = jnp.dtype(x.dtype if out_dtype is None else out_dtype)
    has_r, has_s, has_b = r is not None, s is not None, bias is not None

    # ---- tiling --------------------------------------------------------------
    d_out_pad = _round_up(d_out, _LANE)
    pad_n = d_out_pad - d_out
    rows = batch * k
    tr, rows_pad = _pick_row_tile(rows, k, block_rows)
    pad_m = rows_pad - rows
    nrep = tr // k
    tk = _pick_k_tile(d_in, block_k)
    tn = _largest_divisor_tile(d_out_pad, block_n, _LANE)
    grid = (rows_pad // tr, d_out_pad // tn, d_in // tk)

    # ---- parameter prep (TODO(synk): hoist to init time in production) -------
    # Pre-cast to matmul_dtype and lane-pad: no per-step weight cast in-kernel,
    # half the weight DMA/VMEM bytes when bf16.
    w_t = jnp.pad(weight.T.astype(matmul_dtype), ((0, 0), (0, pad_n)))   # (d_in, d_out_pad)

    x2 = x.reshape(rows, d_in)                      # free contiguous merge of (B, k)
    if pad_m:
        x2 = jnp.pad(x2, ((0, pad_m), (0, 0)))      # zero rows; sliced off at the end

    inputs = [x2, w_t]
    in_specs = [
        pl.BlockSpec((tr, tk), lambda i, j, kk: (i, kk)),
        pl.BlockSpec((tk, tn), lambda i, j, kk: (kk, j)),
    ]
    b_rows = 0
    if has_r:
        # Row m of a tile is member m % k (tr is a multiple of k), so one tile-sized
        # periodic copy in matmul_dtype serves every grid step.
        inputs.append(jnp.tile(r.astype(matmul_dtype), (nrep, 1)))          # (tr, d_in)
        in_specs.append(pl.BlockSpec((tr, tk), lambda i, j, kk: (0, kk)))
    if has_s:
        s_tiled = jnp.tile(jnp.pad(s.astype(jnp.float32), ((0, 0), (0, pad_n))),
                           (nrep, 1))                                        # (tr, d_out_pad)
        inputs.append(s_tiled)
        in_specs.append(pl.BlockSpec((tr, tn), lambda i, j, kk: (0, j)))
    if has_b:
        b2 = bias if bias.ndim == 2 else bias[None, :]                       # (1|k, d_out)
        b2 = jnp.pad(b2.astype(jnp.float32), ((0, 0), (0, pad_n)))
        if b2.shape[0] > 1:
            b2 = jnp.tile(b2, (nrep, 1))                                     # per-member bias
        b_rows = b2.shape[0]
        inputs.append(b2)
        in_specs.append(pl.BlockSpec((b_rows, tn), lambda i, j, kk: (0, j)))

    # ---- VMEM budget (double-buffered tiles + f32 accumulator) ---------------
    mm_b = matmul_dtype.itemsize
    buf_bytes = 2 * tr * tk * x.dtype.itemsize          # x tile
    buf_bytes += 2 * tk * tn * mm_b                      # weight tile
    if has_r:
        buf_bytes += 2 * tr * tk * mm_b
    if has_s:
        buf_bytes += 2 * tr * tn * 4
    if has_b:
        buf_bytes += 2 * b_rows * tn * 4
    buf_bytes += 2 * tr * tn * out_dtype.itemsize        # out tile
    buf_bytes += tr * tn * 4                              # accumulator scratch
    vmem_limit = int(min(max(buf_bytes * 1.5, 32 << 20), 64 << 20))

    flops = 2 * rows * d_in * d_out
    bytes_accessed = rows_pad * d_out_pad * out_dtype.itemsize
    for a in inputs:
        bytes_accessed += a.size * a.dtype.itemsize

    kernel = _make_lee_kernel(has_r, has_s, has_b, matmul_dtype)
    out = pl.pallas_call(
        kernel,
        out_shape=jax.ShapeDtypeStruct((rows_pad, d_out_pad), out_dtype),
        grid=grid,
        in_specs=in_specs,
        out_specs=pl.BlockSpec((tr, tn), lambda i, j, kk: (i, j)),
        scratch_shapes=[pltpu.VMEM((tr, tn), jnp.float32)],
        compiler_params=pltpu.CompilerParams(
            dimension_semantics=("parallel", "parallel", "arbitrary"),
            vmem_limit_bytes=vmem_limit),
        cost_estimate=pl.CostEstimate(flops=int(flops), transcendentals=0,
                                      bytes_accessed=int(bytes_accessed)),
    )(*inputs)

    if pad_m or pad_n:
        # TODO(synk): keep the padded layout through the consumer (or fuse this slice
        # into the next op) to avoid the extra output pass when padding is needed.
        out = out[:rows, :d_out]
    return out.reshape(batch, k, d_out)


# ---------------------------------------------------------------------------
# Parameter construction mirroring LinearEfficientEnsemble.__init__ /
# reset_parameters (PyTorch layouts; init reproduced distributionally).
# ---------------------------------------------------------------------------
def init_rsqrt_uniform(key, shape, d, dtype=jnp.float32):
    bound = d ** (-0.5)
    return jax.random.uniform(key, shape, dtype=dtype, minval=-bound, maxval=bound)


def init_random_signs(key, shape, dtype=jnp.float32):
    return jax.random.bernoulli(key, 0.5, shape).astype(dtype) * 2.0 - 1.0


def make_lee_params(key, *, in_features, out_features, k, bias=True,
                    ensemble_scaling_in, ensemble_scaling_out, ensemble_bias,
                    scaling_init):
    assert k > 0
    if ensemble_bias:
        assert bias
    kw, kr, ks, kb = jax.random.split(key, 4)
    weight = init_rsqrt_uniform(kw, (out_features, in_features), in_features)

    def scale(kk, shape):
        if scaling_init == "ones":
            return jnp.ones(shape, jnp.float32)
        assert scaling_init == "random-signs"
        return init_random_signs(kk, shape)

    r = scale(kr, (k, in_features)) if ensemble_scaling_in else None
    s = scale(ks, (k, out_features)) if ensemble_scaling_out else None
    if bias:
        b_row = init_rsqrt_uniform(kb, (out_features,), in_features)
        # PyTorch reset_parameters copies the same row into every member slot.
        b = jnp.broadcast_to(b_row, (k, out_features)) if ensemble_bias else b_row
    else:
        b = None
    return {"weight": weight, "r": r, "s": s, "bias": b}


def lee_reference(params, x):
    """Pure-JAX reference mirroring LinearEfficientEnsemble.forward."""
    y = x
    if params["r"] is not None:
        y = y * params["r"]
    y = jnp.einsum("bki,oi->bko", y, params["weight"],
                   precision=jax.lax.Precision.HIGHEST)
    if params["s"] is not None:
        y = y * params["s"]
    if params["bias"] is not None:
        y = y + params["bias"]
    return y


if __name__ == "__main__":
    key = jax.random.PRNGKey(0)
    kx1, kx2, kp1, kp2, kp3 = jax.random.split(key, 5)

    fwd = jax.jit(linear_efficient_ensemble_forward,
                  static_argnames=("block_rows", "block_n", "block_k",
                                   "matmul_dtype", "out_dtype"))

    # Config 1: full BatchEnsemble (r, s, per-member bias, random-signs init).
    B, K, D_IN, D_OUT = 8, 4, 32, 16
    x = jax.random.normal(kx1, (B, K, D_IN), dtype=jnp.float32)
    p1 = make_lee_params(kp1, in_features=D_IN, out_features=D_OUT, k=K,
                         bias=True, ensemble_scaling_in=True,
                         ensemble_scaling_out=True, ensemble_bias=True,
                         scaling_init="random-signs")
    ref1 = lee_reference(p1, x)

    y1 = jax.block_until_ready(fwd(p1, x, matmul_dtype=jnp.float32))
    assert y1.shape == (B, K, D_OUT), y1.shape
    assert jnp.allclose(y1, ref1, atol=1e-4, rtol=1e-4), "config-1 f32 mismatch"

    # Same layer with the default bf16 operands + f32 accumulation fast path.
    y1_bf16 = jax.block_until_ready(fwd(p1, x))
    assert jnp.allclose(y1_bf16, ref1, atol=5e-2, rtol=5e-2), "config-1 bf16 mismatch"

    # Config 2: no ensemble scalings, shared bias (degenerates to a shared Linear).
    p2 = make_lee_params(kp2, in_features=D_IN, out_features=D_OUT, k=K,
                         bias=True, ensemble_scaling_in=False,
                         ensemble_scaling_out=False, ensemble_bias=False,
                         scaling_init="ones")
    y2 = jax.block_until_ready(fwd(p2, x, matmul_dtype=jnp.float32))
    assert jnp.allclose(y2, lee_reference(p2, x), atol=1e-4, rtol=1e-4), \
        "config-2 mismatch"

    # Config 3: odd shapes (B*k not tile-aligned, d_out not a multiple of 128),
    # exercising the row-padding and d_out-padding paths, r only, no bias.
    B3, K3, D_IN3, D_OUT3 = 5, 3, 48, 72
    x3 = jax.random.normal(kx2, (B3, K3, D_IN3), dtype=jnp.float32)
    p3 = make_lee_params(kp3, in_features=D_IN3, out_features=D_OUT3, k=K3,
                         bias=False, ensemble_scaling_in=True,
                         ensemble_scaling_out=False, ensemble_bias=False,
                         scaling_init="random-signs")
    y3 = jax.block_until_ready(fwd(p3, x3, matmul_dtype=jnp.float32))
    assert y3.shape == (B3, K3, D_OUT3), y3.shape
    assert jnp.allclose(y3, lee_reference(p3, x3), atol=1e-4, rtol=1e-4), \
        "config-3 mismatch"

    print("KERNEL_OK")
</pallas_src>

<mosaic_0001>
module attributes {stable_mosaic.version = 11 : i64} {
  func.func @kernel(%arg0: i32, %arg1: i32, %arg2: i32, %arg3: memref<16x32xf32, #tpu.memory_space<vmem>>, %arg4: memref<32x128xf32, #tpu.memory_space<vmem>>, %arg5: memref<16x32xf32, #tpu.memory_space<vmem>>, %arg6: memref<16x128xf32, #tpu.memory_space<vmem>>, %arg7: memref<16x128xf32, #tpu.memory_space<vmem>>, %arg8: memref<16x128xf32, #tpu.memory_space<vmem>>, %arg9: memref<16x128xf32, #tpu.memory_space<vmem>>) attributes {dimension_semantics = [#tpu.dimension_semantics<parallel>, #tpu.dimension_semantics<parallel>, #tpu.dimension_semantics<arbitrary>], iteration_bounds = array<i64: 2, 1, 1>, scalar_prefetch = 0 : i64, scratch_operands = 1 : i64, tpu.core_type = #tpu.core_type<tc>, window_params = [{transform_indices = @transform_0, window_bounds = array<i64: 16, 32>}, {transform_indices = @transform_1, window_bounds = array<i64: 32, 128>}, {transform_indices = @transform_2, window_bounds = array<i64: 16, 32>}, {transform_indices = @transform_3, window_bounds = array<i64: 16, 128>}, {transform_indices = @transform_4, window_bounds = array<i64: 16, 128>}, {transform_indices = @transform_5, window_bounds = array<i64: 16, 128>}]} {
    %c0_i32 = arith.constant 0 : i32
    %0 = arith.cmpi eq, %arg2, %c0_i32 : i32
    %1 = arith.extui %0 : i1 to i32
    %c0_i32_0 = arith.constant 0 : i32
    %2 = arith.cmpi ne, %1, %c0_i32_0 : i32
    scf.if %2 {
      %cst_12 = arith.constant 0.000000e+00 : f32
      %14 = vector.broadcast %cst_12 : f32 to vector<16x128xf32>
      %c0_13 = arith.constant 0 : index
      %c0_14 = arith.constant 0 : index
      %15 = vector.load %arg9[%c0_13, %c0_14] : memref<16x128xf32, #tpu.memory_space<vmem>>, vector<16x128xf32>
      tpu.vector_store %arg9[%c0_13, %c0_14], %14 {strides = array<i32>} : memref<16x128xf32, #tpu.memory_space<vmem>>, vector<16x128xf32>,
    } else {
    }
    %c0 = arith.constant 0 : index
    %c0_1 = arith.constant 0 : index
    %3 = vector.load %arg3[%c0, %c0_1] : memref<16x32xf32, #tpu.memory_space<vmem>>, vector<16x32xf32>
    %c0_2 = arith.constant 0 : index
    %c0_3 = arith.constant 0 : index
    %4 = vector.load %arg5[%c0_2, %c0_3] : memref<16x32xf32, #tpu.memory_space<vmem>>, vector<16x32xf32>
    %5 = arith.mulf %3, %4 : vector<16x32xf32>
    %c0_4 = arith.constant 0 : index
    %c0_5 = arith.constant 0 : index
    %6 = vector.load %arg9[%c0_4, %c0_5] : memref<16x128xf32, #tpu.memory_space<vmem>>, vector<16x128xf32>
    %c0_6 = arith.constant 0 : index
    %c0_7 = arith.constant 0 : index
    %7 = vector.load %arg4[%c0_6, %c0_7] : memref<32x128xf32, #tpu.memory_space<vmem>>, vector<32x128xf32>
    %cst = arith.constant dense<0.000000e+00> : vector<16x128xf32>
    %8 = tpu.matmul %5, %7, %cst {dimension_numbers = #tpu.dot_dimension_numbers<[1], [0], [0], [1], [0, 0, 1, 1], [], []>} : vector<16x32xf32>, vector<32x128xf32>, vector<16x128xf32> -> vector<16x128xf32>
    %9 = arith.addf %6, %8 : vector<16x128xf32>
    %c0_8 = arith.constant 0 : index
    %c0_9 = arith.constant 0 : index
    %10 = vector.load %arg9[%c0_8, %c0_9] : memref<16x128xf32, #tpu.memory_space<vmem>>, vector<16x128xf32>
    tpu.vector_store %arg9[%c0_8, %c0_9], %9 {strides = array<i32>} : memref<16x128xf32, #tpu.memory_space<vmem>>, vector<16x128xf32>,
    %c0_i32_10 = arith.constant 0 : i32
    %11 = arith.cmpi eq, %arg2, %c0_i32_10 : i32
    %12 = arith.extui %11 : i1 to i32
    %c0_i32_11 = arith.constant 0 : i32
    %13 = arith.cmpi ne, %12, %c0_i32_11 : i32
    scf.if %13 {
      %c0_12 = arith.constant 0 : index
      %c0_13 = arith.constant 0 : index
      %14 = vector.load %arg9[%c0_12, %c0_13] : memref<16x128xf32, #tpu.memory_space<vmem>>, vector<16x128xf32>
      %c0_14 = arith.constant 0 : index
      %c0_15 = arith.constant 0 : index
      %15 = vector.load %arg6[%c0_14, %c0_15] : memref<16x128xf32, #tpu.memory_space<vmem>>, vector<16x128xf32>
      %16 = arith.mulf %14, %15 : vector<16x128xf32>
      %c0_16 = arith.constant 0 : index
      %c0_17 = arith.constant 0 : index
      %17 = vector.load %arg7[%c0_16, %c0_17] : memref<16x128xf32, #tpu.memory_space<vmem>>, vector<16x128xf32>
      %18 = arith.addf %16, %17 : vector<16x128xf32>
      %c0_18 = arith.constant 0 : index
      %c0_19 = arith.constant 0 : index
      %19 = vector.load %arg8[%c0_18, %c0_19] : memref<16x128xf32, #tpu.memory_space<vmem>>, vector<16x128xf32>
      tpu.vector_store %arg8[%c0_18, %c0_19], %18 {strides = array<i32>} : memref<16x128xf32, #tpu.memory_space<vmem>>, vector<16x128xf32>,
    } else {
    }
    return
  }
  func.func @transform_0(%arg0: i32, %arg1: i32, %arg2: i32) -> (i32, i32) {
    %c0_i32 = arith.constant 0 : i32
    return %arg0, %arg2 : i32, i32
  }
  func.func @transform_1(%arg0: i32, %arg1: i32, %arg2: i32) -> (i32, i32) {
    %c0_i32 = arith.constant 0 : i32
    return %arg2, %arg1 : i32, i32
  }
  func.func @transform_2(%arg0: i32, %arg1: i32, %arg2: i32) -> (i32, i32) {
    %c0_i32 = arith.constant 0 : i32
    %c0_i32_0 = arith.constant 0 : i32
    return %c0_i32, %arg2 : i32, i32
  }
  func.func @transform_3(%arg0: i32, %arg1: i32, %arg2: i32) -> (i32, i32) {
    %c0_i32 = arith.constant 0 : i32
    %c0_i32_0 = arith.constant 0 : i32
    return %c0_i32, %arg1 : i32, i32
  }
  func.func @transform_4(%arg0: i32, %arg1: i32, %arg2: i32) -> (i32, i32) {
    %c0_i32 = arith.constant 0 : i32
    %c0_i32_0 = arith.constant 0 : i32
    return %c0_i32, %arg1 : i32, i32
  }
  func.func @transform_5(%arg0: i32, %arg1: i32, %arg2: i32) -> (i32, i32) {
    %c0_i32 = arith.constant 0 : i32
    return %arg0, %arg1 : i32, i32
  }
}

</mosaic_0001>

<llo_original>
// kernel: linear_efficient_ensemble_forward.1
$region0: #{linear_efficient_ensemble_forward.1}
  #allocation0 [shape = 'u32[]', space=smem, size = 0x4, offset = 0x4, fixed_abs, tag = 'smem constant byte address 0x4 - core index']
  #allocation1 [shape = 'u32[72,128]{1,0:T(1,128)}', space=vmem, size = 0x9000, scoped, tag = 'internal scratch']
  #allocation2 [shape = 'f32[16,128]{1,0:T(8,128)}', space=vmem, size = 0x2000, scoped, tag = 'scratch operand']
  %s0 = inlined_call_operand.vmem [shape: f32[32,32], index: 0, kind: input, shape index: {}]
  %s1 = inlined_call_operand.vmem [shape: f32[32,128], index: 1, kind: input, shape index: {}]
  %s2 = inlined_call_operand.vmem [shape: f32[16,32], index: 2, kind: input, shape index: {}]
  %s3 = inlined_call_operand.vmem [shape: f32[16,128], index: 3, kind: input, shape index: {}]
  %s4 = inlined_call_operand.vmem [shape: f32[16,128], index: 4, kind: input, shape index: {}]
  %s5 = inlined_call_operand.hbm [shape: f32[32,128], index: 5, kind: output, shape index: {}]
  %s6 = sld [smem:[#allocation0]]
  $region61: #{linear_efficient_ensemble_forward.1} parent=0
    _
  %s8 = ssub.s32 1, %s6
  %s9 = scalar_select 0, %s8, %s6
  $region1: #{linear_efficient_ensemble_forward.1} parent=0
    #allocation3 [shape = 'u8[16384]{0}', space=vmem, size = 0x4000, scoped, tag = 'output window, operand 0']
    #allocation4 [shape = 's32[2]{0}', space=sflag, size = 0x8, scoped, tag = 'scoped memory for linear_efficient_ensemble_forward.1']
    %10 = vsyncpa [#allocation4], 0
    %s11 = scalar_lea.sflag [#allocation4], 1
    %12 = vsyncpa %s11, 0
    loop: start=0, step=1, limit=4
    $region2: #{linear_efficient_ensemble_forward.1} parent=1 // loop_pre_header
      _
    $region3: #{linear_efficient_ensemble_forward.1} parent=1 // loop_header
      %s14 = sphi 0, %s18
      %p15 = scmp.ge.s32.totalorder %s14, 4
      %s21 = sphi 0, %s40
      %s22 = sphi 0, %s36
      %s23 = sphi 0, %s32
      %s24 = sphi 0, %s21
      %s25 = sphi 0, %s22
      %s26 = sphi 0, %s23
      %s27 = sphi 0, %s24
      %s28 = sphi 0, %s25
      %s29 = sphi 0, %s26
      %s45 = sphi 0, %s47
      %s48 = sphi 0, %s45
      %s49 = sphi 0, %s48
      %s65 = sphi 0, %s49
      %s73 = sphi 0, %s75
      %s76 = sphi 0, %s73
      %s77 = sphi 0, %s76
      %s93 = sphi 0, %s77
      %s99 = sphi 0, %s101
      %s102 = sphi 0, %s99
      %s103 = sphi 0, %s102
      %s119 = sphi 0, %s103
      %s125 = sphi 0, %s127
      %s128 = sphi 0, %s125
      %s129 = sphi 0, %s128
      %s145 = sphi 0, %s129
      %s151 = sphi 0, %s153
      %s154 = sphi 0, %s151
      %s155 = sphi 0, %s154
      %s171 = sphi 0, %s155
      %s179 = sphi 0, %s181
      %s182 = sphi 0, %s179
      %s183 = sphi 0, %s182
      %s199 = sphi 0, %s183
    $region4: #{linear_efficient_ensemble_forward.1} parent=1 // loop_header_branch
      %17 = sbr.rel (%p15) target = $region8
    $region5: #{linear_efficient_ensemble_forward.1} parent=1 // loop_body
      %s19 = ssub.s32 %s14, 1
      %s20 = ssub.s32 %s14, 2
      %s30 = sadd.s32 1, %s23
      %p31 = scmp.ge.s32.totalorder %s30, 1
      %s32 = scalar_select %p31, 0, %s30
      %s33 = sadd.s32 1, %s22
      %s34 = scalar_select %p31, %s33, %s22
      %p35 = scmp.ge.s32.totalorder %s34, 1
      %s36 = scalar_select %p35, 0, %s34
      %s37 = sadd.s32 1, %s21
      %s38 = scalar_select %p35, %s37, %s21
      %p39 = scmp.ge.s32.totalorder %s38, 2
      %s40 = scalar_select %p39, 0, %s38
      %s41 = ssub.s32 %s21, %s40
      %s42 = ssub.s32 %s23, %s32
      %s43 = sor.u32 %s41, %s42
      %p44 = scmp.eq.s32.totalorder %s43, 0
      %s46 = sadd.s32 %s45, 1
      %s47 = scalar_select %p44, %s45, %s46
      %p50 = pneg %p44
      %p51 = scmp.eq.s32.totalorder %s14, 1
      %p52 = por %p50, %p51
      %p53 = scmp.ne.s32.totalorder %s45, %s48
      %p54 = scmp.eq.s32.totalorder %s14, 0
      %p55 = por %p53, %p54
      %p56 = scmp.ne.s32.totalorder %s45, %s48
      %p57 = scmp.eq.s32.totalorder %s19, 1
      %p58 = por %p56, %p57
      %p59 = scmp.ne.s32.totalorder %s48, %s49
      %p60 = scmp.eq.s32.totalorder %s19, 0
      %p61 = por %p59, %p60
      %p62 = scmp.ne.s32.totalorder %s48, %s49
      %p63 = scmp.eq.s32.totalorder %s20, 1
      %p64 = por %p62, %p63
      %p66 = scmp.ne.s32.totalorder %s49, %s65
      %p67 = scmp.eq.s32.totalorder %s20, 0
      %p68 = por %p66, %p67
      %s69 = ssub.s32 %s23, %s32
      %s70 = ssub.s32 %s22, %s36
      %s71 = sor.u32 %s69, %s70
      %p72 = scmp.eq.s32.totalorder %s71, 0
      %s74 = sadd.s32 %s73, 1
      %s75 = scalar_select %p72, %s73, %s74
      %p78 = pneg %p72
      %p79 = scmp.eq.s32.totalorder %s14, 1
      %p80 = por %p78, %p79
      %p81 = scmp.ne.s32.totalorder %s73, %s76
      %p82 = scmp.eq.s32.totalorder %s14, 0
      %p83 = por %p81, %p82
      %p84 = scmp.ne.s32.totalorder %s73, %s76
      %p85 = scmp.eq.s32.totalorder %s19, 1
      %p86 = por %p84, %p85
      %p87 = scmp.ne.s32.totalorder %s76, %s77
      %p88 = scmp.eq.s32.totalorder %s19, 0
      %p89 = por %p87, %p88
      %p90 = scmp.ne.s32.totalorder %s76, %s77
      %p91 = scmp.eq.s32.totalorder %s20, 1
      %p92 = por %p90, %p91
      %p94 = scmp.ne.s32.totalorder %s77, %s93
      %p95 = scmp.eq.s32.totalorder %s20, 0
      %p96 = por %p94, %p95
      %s97 = ssub.s32 %s23, %s32
      %p98 = scmp.eq.s32.totalorder %s97, 0
      %s100 = sadd.s32 %s99, 1
      %s101 = scalar_select %p98, %s99, %s100
      %p104 = pneg %p98
      %p105 = scmp.eq.s32.totalorder %s14, 1
      %p106 = por %p104, %p105
      %p107 = scmp.ne.s32.totalorder %s99, %s102
      %p108 = scmp.eq.s32.totalorder %s14, 0
      %p109 = por %p107, %p108
      %p110 = scmp.ne.s32.totalorder %s99, %s102
      %p111 = scmp.eq.s32.totalorder %s19, 1
      %p112 = por %p110, %p111
      %p113 = scmp.ne.s32.totalorder %s102, %s103
      %p114 = scmp.eq.s32.totalorder %s19, 0
      %p115 = por %p113, %p114
      %p116 = scmp.ne.s32.totalorder %s102, %s103
      %p117 = scmp.eq.s32.totalorder %s20, 1
      %p118 = por %p116, %p117
      %p120 = scmp.ne.s32.totalorder %s103, %s119
      %p121 = scmp.eq.s32.totalorder %s20, 0
      %p122 = por %p120, %p121
      %s123 = ssub.s32 %s22, %s36
      %p124 = scmp.eq.s32.totalorder %s123, 0
      %s126 = sadd.s32 %s125, 1
      %s127 = scalar_select %p124, %s125, %s126
      %p130 = pneg %p124
      %p131 = scmp.eq.s32.totalorder %s14, 1
      %p132 = por %p130, %p131
      %p133 = scmp.ne.s32.totalorder %s125, %s128
      %p134 = scmp.eq.s32.totalorder %s14, 0
      %p135 = por %p133, %p134
      %p136 = scmp.ne.s32.totalorder %s125, %s128
      %p137 = scmp.eq.s32.totalorder %s19, 1
      %p138 = por %p136, %p137
      %p139 = scmp.ne.s32.totalorder %s128, %s129
      %p140 = scmp.eq.s32.totalorder %s19, 0
      %p141 = por %p139, %p140
      %p142 = scmp.ne.s32.totalorder %s128, %s129
      %p143 = scmp.eq.s32.totalorder %s20, 1
      %p144 = por %p142, %p143
      %p146 = scmp.ne.s32.totalorder %s129, %s145
      %p147 = scmp.eq.s32.totalorder %s20, 0
      %p148 = por %p146, %p147
      %s149 = ssub.s32 %s22, %s36
      %p150 = scmp.eq.s32.totalorder %s149, 0
      %s152 = sadd.s32 %s151, 1
      %s153 = scalar_select %p150, %s151, %s152
      %p156 = pneg %p150
      %p157 = scmp.eq.s32.totalorder %s14, 1
      %p158 = por %p156, %p157
      %p159 = scmp.ne.s32.totalorder %s151, %s154
      %p160 = scmp.eq.s32.totalorder %s14, 0
      %p161 = por %p159, %p160
      %p162 = scmp.ne.s32.totalorder %s151, %s154
      %p163 = scmp.eq.s32.totalorder %s19, 1
      %p164 = por %p162, %p163
      %p165 = scmp.ne.s32.totalorder %s154, %s155
      %p166 = scmp.eq.s32.totalorder %s19, 0
      %p167 = por %p165, %p166
      %p168 = scmp.ne.s32.totalorder %s154, %s155
      %p169 = scmp.eq.s32.totalorder %s20, 1
      %p170 = por %p168, %p169
      %p172 = scmp.ne.s32.totalorder %s155, %s171
      %p173 = scmp.eq.s32.totalorder %s20, 0
      %p174 = por %p172, %p173
      %s175 = ssub.s32 %s21, %s40
      %s176 = ssub.s32 %s22, %s36
      %s177 = sor.u32 %s175, %s176
      %p178 = scmp.eq.s32.totalorder %s177, 0
      %s180 = sadd.s32 %s179, 1
      %s181 = scalar_select %p178, %s179, %s180
      %p184 = pneg %p178
      %p185 = scmp.eq.s32.totalorder %s14, 1
      %p186 = por %p184, %p185
      %p187 = scmp.ne.s32.totalorder %s179, %s182
      %p188 = scmp.eq.s32.totalorder %s14, 0
      %p189 = por %p187, %p188
      %p190 = scmp.ne.s32.totalorder %s179, %s182
      %p191 = scmp.eq.s32.totalorder %s19, 1
      %p192 = por %p190, %p191
      %p193 = scmp.ne.s32.totalorder %s182, %s183
      %p194 = scmp.eq.s32.totalorder %s19, 0
      %p195 = por %p193, %p194
      %p196 = scmp.ne.s32.totalorder %s182, %s183
      %p197 = scmp.eq.s32.totalorder %s20, 1
      %p198 = por %p196, %p197
      %p200 = scmp.ne.s32.totalorder %s183, %s199
      %p201 = scmp.eq.s32.totalorder %s20, 0
      %p202 = por %p200, %p201
      %p203 = scmp.le.s32.totalorder 1, %s14
      %p204 = scmp.lt.s32.totalorder %s14, 3
      %p205 = pnand %p203, %p204
      %p206 = pneg %p205
      // Predicated region
      $region9: #{linear_efficient_ensemble_forward.1} parent=5 // pred_check
        _
      $region10: #{linear_efficient_ensemble_forward.1} parent=5 // pred_check_branch
        %208 = sbr.rel (%p205) target = $region12
      $region11: #{linear_efficient_ensemble_forward.1} parent=5 // pred_region
        %s209 = ssub.s32 %s14, 1
        // Predicated region
        $region13: #{linear_efficient_ensemble_forward.1} parent=11 // pred_check
          %p210 = pneg %p89
        $region14: #{linear_efficient_ensemble_forward.1} parent=11 // pred_check_branch
          %212 = sbr.rel (%p210) target = $region16
        $region15: #{linear_efficient_ensemble_forward.1} parent=11 // pred_region
          %s213 = smul.u32 4, %s26
          %p214 = scmp.lt.s32.totalorder %s213, 3
          %s215 = scalar_select %p214, %s213, 3
          %p216 = scmp.lt.s32.totalorder %s25, 0
          %s217 = scalar_select %p216, %s25, 0
          %s218 = sadd.s32 %s217, %s215
          %s219 = smul.addr %s218, 8
          %s220 = scalar_lea.vmem %s1, %s219
          %s221 = smul.u32 4, %s26
        $region16: #{linear_efficient_ensemble_forward.1} parent=11 // pred_fallthru
          _
        // Predicated region
        $region17: #{linear_efficient_ensemble_forward.1} parent=11 // pred_check
          %p222 = pneg %p115
        $region18: #{linear_efficient_ensemble_forward.1} parent=11 // pred_check_branch
          %224 = sbr.rel (%p222) target = $region20
        $region19: #{linear_efficient_ensemble_forward.1} parent=11 // pred_region
          %p225 = scmp.lt.s32.totalorder %s26, 0
          %s226 = scalar_select %p225, %s26, 0
          %s227 = smul.addr %s226, 8
          %s228 = scalar_lea.vmem %s2, %s227
        $region20: #{linear_efficient_ensemble_forward.1} parent=11 // pred_fallthru
          _
        // Predicated region
        $region21: #{linear_efficient_ensemble_forward.1} parent=11 // pred_check
          %p229 = pneg %p141
        $region22: #{linear_efficient_ensemble_forward.1} parent=11 // pred_check_branch
          %231 = sbr.rel (%p229) target = $region24
        $region23: #{linear_efficient_ensemble_forward.1} parent=11 // pred_region
          %p232 = scmp.lt.s32.totalorder %s25, 0
          %s233 = scalar_select %p232, %s25, 0
          %s234 = smul.addr %s233, 8
          %s235 = scalar_lea.vmem %s3, %s234
        $region24: #{linear_efficient_ensemble_forward.1} parent=11 // pred_fallthru
          _
        // Predicated region
        $region25: #{linear_efficient_ensemble_forward.1} parent=11 // pred_check
          %p236 = pneg %p167
        $region26: #{linear_efficient_ensemble_forward.1} parent=11 // pred_check_branch
          %238 = sbr.rel (%p236) target = $region28
        $region27: #{linear_efficient_ensemble_forward.1} parent=11 // pred_region
          %p239 = scmp.lt.s32.totalorder %s25, 0
          %s240 = scalar_select %p239, %s25, 0
          %s241 = smul.addr %s240, 8
          %s242 = scalar_lea.vmem %s4, %s241
        $region28: #{linear_efficient_ensemble_forward.1} parent=11 // pred_fallthru
          _
      $region12: #{linear_efficient_ensemble_forward.1} parent=5 // pred_fallthru
        _
      %p243 = scmp.lt.s32.totalorder %s14, 2
      // Predicated region
      $region29: #{linear_efficient_ensemble_forward.1} parent=5 // pred_check
        %p244 = pneg %p243
      $region30: #{linear_efficient_ensemble_forward.1} parent=5 // pred_check_branch
        %246 = sbr.rel (%p244) target = $region32
      $region31: #{linear_efficient_ensemble_forward.1} parent=5 // pred_region
        // Predicated region
        $region33: #{linear_efficient_ensemble_forward.1} parent=31 // pred_check
          %p247 = pneg %p55
        $region34: #{linear_efficient_ensemble_forward.1} parent=31 // pred_check_branch
          %249 = sbr.rel (%p247) target = $region36
        $region35: #{linear_efficient_ensemble_forward.1} parent=31 // pred_region
          %s250 = smul.u32 2, %s21
          %p251 = scmp.lt.s32.totalorder %s250, 3
          %s252 = scalar_select %p251, %s250, 3
          %p253 = scmp.lt.s32.totalorder %s23, 0
          %s254 = scalar_select %p253, %s23, 0
          %s255 = sadd.s32 %s254, %s252
          %s256 = smul.addr %s255, 8
          %s257 = scalar_lea.vmem %s0, %s256
          %s258 = smul.u32 2, %s21
        $region36: #{linear_efficient_ensemble_forward.1} parent=31 // pred_fallthru
          _
      $region32: #{linear_efficient_ensemble_forward.1} parent=5 // pred_fallthru
        _
      %p259 = scmp.le.s32.totalorder 1, %s14
      %p260 = scmp.lt.s32.totalorder %s14, 3
      %p261 = pnand %p259, %p260
      %p262 = pneg %p261
      // Predicated region
      $region37: #{linear_efficient_ensemble_forward.1} parent=5 // pred_check
        _
      $region38: #{linear_efficient_ensemble_forward.1} parent=5 // pred_check_branch
        %264 = sbr.rel (%p261) target = $region40
      $region39: #{linear_efficient_ensemble_forward.1} parent=5 // pred_region
        %s265 = ssub.s32 %s14, 1
        %s266 = smul.u32 2, %s24
        %p267 = scmp.lt.s32.totalorder %s266, 3
        %s268 = scalar_select %p267, %s266, 3
        %p269 = scmp.lt.s32.totalorder %s26, 0
        %s270 = scalar_select %p269, %s26, 0
        %s271 = sadd.s32 %s270, %s268
        %s272 = smul.addr %s271, 8
        %s273 = scalar_lea.vmem %s0, %s272
        %p274 = pneg %p61
        %p275 = pneg %p58
        %s276 = smul.u32 4, %s26
        %p277 = scmp.lt.s32.totalorder %s276, 3
        %s278 = scalar_select %p277, %s276, 3
        %p279 = scmp.lt.s32.totalorder %s25, 0
        %s280 = scalar_select %p279, %s25, 0
        %s281 = sadd.s32 %s280, %s278
        %s282 = smul.addr %s281, 8
        %s283 = scalar_lea.vmem %s1, %s282
        %p284 = pneg %p89
        %p285 = pneg %p86
        %p286 = scmp.lt.s32.totalorder %s26, 0
        %s287 = scalar_select %p286, %s26, 0
        %s288 = smul.addr %s287, 8
        %s289 = scalar_lea.vmem %s2, %s288
        %p290 = pneg %p115
        %p291 = pneg %p112
        %p292 = scmp.lt.s32.totalorder %s25, 0
        %s293 = scalar_select %p292, %s25, 0
        %s294 = smul.addr %s293, 8
        %s295 = scalar_lea.vmem %s3, %s294
        %p296 = pneg %p141
        %p297 = pneg %p138
        %p298 = scmp.lt.s32.totalorder %s25, 0
        %s299 = scalar_select %p298, %s25, 0
        %s300 = smul.addr %s299, 8
        %s301 = scalar_lea.vmem %s4, %s300
        %p302 = pneg %p167
        %p303 = pneg %p164
        %p304 = pneg %p195
        %p305 = pneg %p192
        %s306 = sand.u32 %s182, 1
        %s307 = scalar_lea.sflag [#allocation4], %s306
        %s308 = sand.u32 %s182, 1
        %s309 = smul.addr %s308, 16
        %s310 = scalar_lea.vmem [#allocation3], %s309
        %s311 = smul.u32 2, %s24
        %p312 = scmp.lt.s32.totalorder %s311, 3
        %s313 = scalar_select %p312, %s311, 3
        %p314 = scmp.lt.s32.totalorder %s26, 0
        %s315 = scalar_select %p314, %s26, 0
        %s316 = sadd.s32 %s315, %s313
        %s317 = smul.addr %s316, 8
        %s318 = scalar_lea.vmem %s0, %s317
        %s319 = smul.u32 2, %s24
        %s320 = smul.u32 4, %s26
        %p321 = scmp.lt.s32.totalorder %s320, 3
        %s322 = scalar_select %p321, %s320, 3
        %p323 = scmp.lt.s32.totalorder %s25, 0
        %s324 = scalar_select %p323, %s25, 0
        %s325 = sadd.s32 %s324, %s322
        %s326 = smul.addr %s325, 8
        %s327 = scalar_lea.vmem %s1, %s326
        %s328 = smul.u32 4, %s26
        %p329 = scmp.lt.s32.totalorder %s26, 0
        %s330 = scalar_select %p329, %s26, 0
        %s331 = smul.addr %s330, 8
        %s332 = scalar_lea.vmem %s2, %s331
        %p333 = scmp.lt.s32.totalorder %s25, 0
        %s334 = scalar_select %p333, %s25, 0
        %s335 = smul.addr %s334, 8
        %s336 = scalar_lea.vmem %s3, %s335
        %p337 = scmp.lt.s32.totalorder %s25, 0
        %s338 = scalar_select %p337, %s25, 0
        %s339 = smul.addr %s338, 8
        %s340 = scalar_lea.vmem %s4, %s339
        %s341 = smul.u32 2, %s24
        %p342 = scmp.eq.s32.totalorder %s26, 0
        // Predicated region
        $region41: #{linear_efficient_ensemble_forward.1} parent=39 // pred_check
          %p343 = pneg %p342
        $region42: #{linear_efficient_ensemble_forward.1} parent=39 // pred_check_branch
          %345 = sbr.rel (%p343) target = $region44
        $region43: #{linear_efficient_ensemble_forward.1} parent=39 // pred_region
          %346 = vst [vmem:[#allocation2] sm:$0xff] 0.0
          %347 = vst [vmem:[#allocation2 + $0x8] sm:$0xff] 0.0
        $region44: #{linear_efficient_ensemble_forward.1} parent=39 // pred_fallthru
          _
        %v348 = vld [vmem:[%s318] sm:$0xff]
        %v349 = vld [vmem:[%s318 + $0x8] sm:$0xff]
        %v350 = vld [vmem:[%s332] sm:$0xff]
        %v351 = vld [vmem:[%s332 + $0x8] sm:$0xff]
        %v352 = vmul.f32 %v348, %v350
        %v353 = vmul.f32 %v349, %v351
        %v354 = vld [vmem:[#allocation2] sm:$0xff]
        %v355 = vld [vmem:[#allocation2 + $0x8] sm:$0xff]
        %v356 = vld [vmem:[%s327] sm:$0xff]
        %v357 = vld [vmem:[%s327 + $0x8] sm:$0xff]
        %v358 = vld [vmem:[%s327 + $0x10] sm:$0xff]
        %v359 = vld [vmem:[%s327 + $0x18] sm:$0xff]
        %vm360 = vcmask 261120
        %v362 = vsel %vm360, %v352, 0
        %v365 = vsel %vm360, %v353, 0
        %367 = vmatpush.msra.mxu0 0.0
        %368 = vmatpush.msra.mxu0 0.0
        %369 = vmatpush.msra.mxu0 0.0
        %370 = vmatpush.msra.mxu0 0.0
        %371 = vmatpush.msra.mxu0 0.0
        %372 = vmatpush.msra.mxu0 0.0
        %373 = vmatpush.msra.mxu0 0.0
        %374 = vmatpush.msra.mxu0 0.0
        %375 = vmatpush.msra.mxu0 0.0
        %376 = vmatpush.msra.mxu0 0.0
        %377 = vmatpush.msra.mxu0 0.0
        %378 = vmatpush.msra.mxu0 0.0
        %379 = vmatpush.msra.mxu0 %v359
        %380 = vmatpush.msra.mxu0 %v358
        %381 = vmatpush.msra.mxu0 %v357
        %382 = vmatpush.msra.mxu0 %v356
        %383 = vmatmul.f32.gmra.mxu0 %v362
        %v384 = vpop.f32.mrf.mxu0
        %v385 = vadd.f32 0.0, %v384
        %386 = vmatmul.f32.gmra.mxu0 %v365
        %v387 = vpop.f32.mrf.mxu0
        %v388 = vadd.f32 0.0, %v387
        %389 = vdwg.mxu0
        %v390 = vadd.f32 %v354, %v385
        %v391 = vadd.f32 %v355, %v388
        %392 = vst [vmem:[#allocation2] sm:$0xff] %v390
        %393 = vst [vmem:[#allocation2 + $0x8] sm:$0xff] %v391
        // Predicated region
        $region45: #{linear_efficient_ensemble_forward.1} parent=39 // pred_check
          %p394 = pneg %p342
        $region46: #{linear_efficient_ensemble_forward.1} parent=39 // pred_check_branch
          %396 = sbr.rel (%p394) target = $region48
        $region47: #{linear_efficient_ensemble_forward.1} parent=39 // pred_region
          %v397 = vld [vmem:[#allocation2] sm:$0xff]
          %v398 = vld [vmem:[#allocation2 + $0x8] sm:$0xff]
          %v399 = vld [vmem:[%s336] sm:$0xff]
          %v400 = vld [vmem:[%s336 + $0x8] sm:$0xff]
          %v401 = vmul.f32 %v397, %v399
          %v402 = vmul.f32 %v398, %v400
          %v403 = vld [vmem:[%s340] sm:$0xff]
          %v404 = vld [vmem:[%s340 + $0x8] sm:$0xff]
          %v405 = vadd.f32 %v401, %v403
          %v406 = vadd.f32 %v402, %v404
          %407 = vst [vmem:[%s310] sm:$0xff] %v405
          %408 = vst [vmem:[%s310 + $0x8] sm:$0xff] %v406
        $region48: #{linear_efficient_ensemble_forward.1} parent=39 // pred_fallthru
          _
        %s409 = sand.u32 %s182, 1
        %s410 = scalar_lea.sflag [#allocation4], %s409
        %s411 = sand.u32 %s182, 1
        %s412 = smul.addr %s411, 16
        %s413 = scalar_lea.vmem [#allocation3], %s412
        // Predicated region
        $region49: #{linear_efficient_ensemble_forward.1} parent=39 // pred_check
          %p414 = pneg %p192
        $region50: #{linear_efficient_ensemble_forward.1} parent=39 // pred_check_branch
          %416 = sbr.rel (%p414) target = $region52
        $region51: #{linear_efficient_ensemble_forward.1} parent=39 // pred_region
          %s417 = smul.u32 2, %s24
          %419 = vsyncadd %s410, 0
          %s420 = sadd.s32 %s25, %s417
          %s421 = smul.addr %s420, 8
          %s422 = scalar_lea.hbm %s5, %s421
          %s423 = sshll.u32 %s413, 4
          %s424 = int_to_ptr.vmem [resolvable:$true] %s423
          %s425 = sshll.u32 %s422, 4
          %s426 = int_to_ptr.hbm [resolvable:$true] %s425
          %431 = dma.vmem_to_hbm [thread:$0]  %s424, 256, %s426, %s410, 128, 128, 8
        $region52: #{linear_efficient_ensemble_forward.1} parent=39 // pred_fallthru
          _
      $region40: #{linear_efficient_ensemble_forward.1} parent=5 // pred_fallthru
        _
      %p432 = scmp.le.s32.totalorder 2, %s14
      // Predicated region
      $region53: #{linear_efficient_ensemble_forward.1} parent=5 // pred_check
        %p433 = pneg %p432
      $region54: #{linear_efficient_ensemble_forward.1} parent=5 // pred_check_branch
        %435 = sbr.rel (%p433) target = $region56
      $region55: #{linear_efficient_ensemble_forward.1} parent=5 // pred_region
        %s436 = ssub.s32 %s14, 2
        // Predicated region
        $region57: #{linear_efficient_ensemble_forward.1} parent=55 // pred_check
          %p437 = pneg %p198
        $region58: #{linear_efficient_ensemble_forward.1} parent=55 // pred_check_branch
          %439 = sbr.rel (%p437) target = $region60
        $region59: #{linear_efficient_ensemble_forward.1} parent=55 // pred_region
          %s440 = sand.u32 %s183, 1
          %s441 = scalar_lea.sflag [#allocation4], %s440
          %s442 = sand.u32 %s183, 1
          %s443 = smul.addr %s442, 16
          %s444 = scalar_lea.vmem [#allocation3], %s443
          %446 = dma.done %s441, 256
        $region60: #{linear_efficient_ensemble_forward.1} parent=55 // pred_fallthru
          _
      $region56: #{linear_efficient_ensemble_forward.1} parent=5 // pred_fallthru
        _
    $region6: #{linear_efficient_ensemble_forward.1} parent=1 // loop_footer
      %s18 = sadd.s32 1, %s14
    $region7: #{linear_efficient_ensemble_forward.1} parent=1 // loop_footer_branch
      %13 = sbr.rel target = $region3
    $region8: #{linear_efficient_ensemble_forward.1} parent=1 // loop_exit
      _
    %447 = vsyncpa [#allocation4], 1
    %s448 = scalar_lea.sflag [#allocation4], 1
    %449 = vsyncpa %s448, 1

</llo_original>
